<compile_context>
chip_gen: v5e
topology: v5e:2x2
jax: 0.10.0
libtpu: 0.0.40
codegen_flags: <defaults>
</compile_context>

<pallas_src>
import functools

import numpy as np

import jax
import jax.numpy as jnp
from jax import lax
from jax.experimental import pallas as pl
from jax.experimental.pallas import tpu as pltpu


# ---------------------------------------------------------------------------
# Pallas kernel: one deep conv-transpose matmul + fused BatchNorm(train) + ReLU
# ---------------------------------------------------------------------------
def _fused_kernel(x_ref, w_ref, sel_ref, selt_ref, gamma_ref, beta_ref, o_ref, *,
                  eps, inv_count):
    # Single deep bf16 contraction on the MXU: [M, Kpad] x [Kpad, L] -> f32 [M, L].
    y = jnp.dot(x_ref[...], w_ref[...], preferred_element_type=jnp.float32)

    # ---- per-channel BatchNorm (training statistics); channel id = lane % Cout ----
    # Reductions / broadcasts go through small 0/1 selector matmuls (MXU), avoiding
    # relayout-inducing reshapes of the [M, L] slab.  Selectors are wrapper-built.
    sel = sel_ref[...]                                                     # [L, Cp]
    per_row = jnp.dot(y, sel, preferred_element_type=jnp.float32)          # [M, Cp]
    per_row_sq = jnp.dot(y * y, sel, preferred_element_type=jnp.float32)   # [M, Cp]

    mean_c = jnp.sum(per_row, axis=0, keepdims=True) * inv_count           # [1, Cp]
    ex2_c = jnp.sum(per_row_sq, axis=0, keepdims=True) * inv_count         # [1, Cp]
    # E[y^2] - mean^2, clamped >= 0 (f32 accumulation; cancellation guard).
    var_c = jnp.maximum(ex2_c - mean_c * mean_c, 0.0)

    scale_c = lax.rsqrt(var_c + eps) * gamma_ref[...]                      # [1, Cp]
    shift_c = beta_ref[...] - mean_c * scale_c                             # [1, Cp]

    selt = selt_ref[...]                                                   # [Cp, L]
    scale_l = jnp.dot(scale_c, selt, preferred_element_type=jnp.float32)   # [1, L]
    shift_l = jnp.dot(shift_c, selt, preferred_element_type=jnp.float32)   # [1, L]

    # Lane-dense store: full [M, L] tile (L multiple of 128) -> unmasked vst.
    o_ref[...] = jnp.maximum(y * scale_l + shift_l, 0.0).astype(o_ref.dtype)


# ---------------------------------------------------------------------------
# Static sub-pixel tap structure for one spatial axis of a transposed conv.
# Output index o = i*s + r ;  o + p = ih*s + kh  =>  ih = i + (r + p - kh)/s.
# ---------------------------------------------------------------------------
def _subpixel_taps(k, s, p, n_out_sub, n_in):
    taps, t_all = [], []
    for r in range(s):
        lst = []
        for kh in range(k):
            if (r + p - kh) % s == 0:
                t = (r + p - kh) // s
                lst.append((kh, t))
                t_all.append(t)
        taps.append(lst)
    pad_lo = max(0, -min(t_all))
    pad_hi = max(0, (n_out_sub - 1) + max(t_all) - (n_in - 1))
    return taps, pad_lo, pad_hi


# ---------------------------------------------------------------------------
# Wrapper: sub-pixel weight packing + wrapper-side LHS assembly + fused kernel.
# ---------------------------------------------------------------------------
def basic_conv_transpose2d(x, weight, gamma, beta, *, stride, padding, output_padding,
                           eps=1e-3):
    """x: [N, Cin, H, W]; weight: [Cin, Cout, KH, KW] (PyTorch ConvTranspose2d layout)."""
    N, Cin, H, W = x.shape
    _, Cout, KH, KW = weight.shape
    s, p, op = stride, padding, output_padding

    OH = (H - 1) * s - 2 * p + KH + op
    OW = (W - 1) * s - 2 * p + KW + op
    # TODO(synk): generalize to OH/OW not divisible by stride (pad sub-grid and crop).
    assert OH % s == 0 and OW % s == 0, "fast path requires OH, OW divisible by stride"
    OHs, OWs = OH // s, OW // s

    # ---- static tap structure (python ints only) -------------------------------------
    taps_h, pht, phb = _subpixel_taps(KH, s, p, OHs, H)
    taps_w, pwl, pwr = _subpixel_taps(KW, s, p, OWs, W)
    hpad, wpad = H + pht + phb, W + pwl + pwr
    offs_h = sorted({t + pht for lst in taps_h for (_, t) in lst})
    A = len(offs_h)
    L = s * OWs * s * Cout                         # output lanes (r, j, c, co)
    Km = A * wpad * Cin                            # merged contraction depth (e.g. 136)
    Kpad = -(-Km // 128) * 128                     # -> 256 here: MXU-depth aligned
    Cpad = -(-Cout // 128) * 128                   # lane-dense per-channel stats path

    # ---- pack the weight: W[ci,co,kh,kw] -> merged banded [Kpad, L] (bf16) ------------
    place = np.zeros((A, wpad, s, OWs, s, KH, KW), np.float32)
    for r in range(s):
        for kh, t in taps_h[r]:
            a = offs_h.index(t + pht)
            for c in range(s):
                for kw, u in taps_w[c]:
                    for j in range(OWs):
                        place[a, j + u + pwl, r, j, c, kh, kw] = 1.0
    wband = jnp.einsum('axrjchw,iohw->axirjco',
                       jnp.asarray(place), weight.astype(jnp.float32))
    wband = wband.reshape(Km, L)
    wband = jnp.pad(wband, ((0, Kpad - Km), (0, 0))).astype(jnp.bfloat16)

    # ---- LHS assembled in the wrapper: A shifted row-windows merged on the lane axis --
    xp = jnp.pad(jnp.transpose(x, (0, 2, 3, 1)),
                 ((0, 0), (pht, phb), (pwl, pwr), (0, 0)))      # [N, hpad, wpad, Cin]
    x_lhs = jnp.concatenate(
        [xp[:, off:off + OHs].reshape(N, OHs, wpad * Cin) for off in offs_h],
        axis=-1).reshape(N * OHs, Km)
    x_lhs = jnp.pad(x_lhs, ((0, 0), (0, Kpad - Km))).astype(jnp.bfloat16)

    # ---- wrapper-built 0/1 channel selectors and lane-padded gamma/beta ---------------
    lane_ch = np.arange(L) % Cout
    sel_np = (lane_ch[:, None] == np.arange(Cpad)[None, :]).astype(np.float32)
    sel = jnp.asarray(sel_np)                                   # [L, Cpad]
    selt = jnp.asarray(np.ascontiguousarray(sel_np.T))          # [Cpad, L]
    gamma2d = jnp.zeros((1, Cpad), jnp.float32).at[0, :Cout].set(gamma.astype(jnp.float32))
    beta2d = jnp.zeros((1, Cpad), jnp.float32).at[0, :Cout].set(beta.astype(jnp.float32))

    M = N * OHs
    inv_count = 1.0 / float(M * (L // Cout))                    # 1 / (N*OH*OW)

    cost = pl.CostEstimate(
        flops=2 * M * Kpad * L + 4 * M * L * Cpad + 4 * Cpad * L + 8 * M * L,
        transcendentals=Cpad,
        bytes_accessed=(M * Kpad + Kpad * L) * 2 + 2 * L * Cpad * 4 + 2 * Cpad * 4
                       + M * L * 4)

    out2d = pl.pallas_call(
        functools.partial(_fused_kernel, eps=eps, inv_count=inv_count),
        out_shape=jax.ShapeDtypeStruct((M, L), jnp.float32),
        grid=(1,),
        in_specs=[
            pl.BlockSpec((M, Kpad), lambda i: (0, 0)),
            pl.BlockSpec((Kpad, L), lambda i: (0, 0)),
            pl.BlockSpec((L, Cpad), lambda i: (0, 0)),
            pl.BlockSpec((Cpad, L), lambda i: (0, 0)),
            pl.BlockSpec((1, Cpad), lambda i: (0, 0)),
            pl.BlockSpec((1, Cpad), lambda i: (0, 0)),
        ],
        out_specs=pl.BlockSpec((M, L), lambda i: (0, 0)),
        compiler_params=pltpu.CompilerParams(
            dimension_semantics=("arbitrary",),
            vmem_limit_bytes=32 * 1024 * 1024),
        cost_estimate=cost,
    )(x_lhs, wband, sel, selt, gamma2d, beta2d)

    # [(n, i), (r, j, c, co)] -> NCHW  (single XLA transpose; NHWC->NCHW needed anyway)
    out = out2d.reshape(N, OHs, s, OWs, s, Cout)
    return jnp.transpose(out, (0, 5, 1, 2, 3, 4)).reshape(N, Cout, OH, OW)


# ---------------------------------------------------------------------------
# Pure-JAX reference (module semantics) for the sanity check
# ---------------------------------------------------------------------------
def _reference(x, weight, gamma, beta, *, stride, padding, output_padding, eps=1e-3,
               matmul_dtype=jnp.float32):
    KH, KW = weight.shape[2], weight.shape[3]
    s, p, op = stride, padding, output_padding
    w_conv = jnp.transpose(weight, (1, 0, 2, 3))[:, :, ::-1, ::-1]
    lhs = x.astype(matmul_dtype).astype(jnp.float32)
    rhs = w_conv.astype(matmul_dtype).astype(jnp.float32)
    y = lax.conv_general_dilated(
        lhs, rhs, window_strides=(1, 1),
        padding=[(KH - 1 - p, KH - 1 - p + op), (KW - 1 - p, KW - 1 - p + op)],
        lhs_dilation=(s, s),
        dimension_numbers=("NCHW", "OIHW", "NCHW"),
        precision=lax.Precision.HIGHEST)
    mean = jnp.mean(y, axis=(0, 2, 3), keepdims=True)
    var = jnp.mean((y - mean) ** 2, axis=(0, 2, 3), keepdims=True)
    y = (y - mean) * lax.rsqrt(var + eps)
    y = y * gamma.reshape(1, -1, 1, 1) + beta.reshape(1, -1, 1, 1)
    return jnp.maximum(y, 0.0)


if __name__ == "__main__":
    # BasicConvTranspose2d(in_channels=4, out_channels=8, kernel_size=3,
    #                      stride=2, padding=1, output_padding=1)
    N, Cin, H, W = 2, 4, 16, 16
    Cout, K = 8, 3
    stride, padding, output_padding = 2, 1, 1

    key = jax.random.PRNGKey(0)
    kx, kw, kg, kb = jax.random.split(key, 4)
    x = jax.random.normal(kx, (N, Cin, H, W), dtype=jnp.float32)
    # nn.ConvTranspose2d weight shape: (in_channels, out_channels, KH, KW)
    weight = 0.1 * jax.random.normal(kw, (Cin, Cout, K, K), dtype=jnp.float32)
    gamma = 1.0 + 0.1 * jax.random.normal(kg, (Cout,), dtype=jnp.float32)
    beta = 0.1 * jax.random.normal(kb, (Cout,), dtype=jnp.float32)

    fwd = jax.jit(functools.partial(
        basic_conv_transpose2d, stride=stride, padding=padding,
        output_padding=output_padding))
    out = jax.block_until_ready(fwd(x, weight, gamma, beta))

    OH = (H - 1) * stride - 2 * padding + K + output_padding
    OW = (W - 1) * stride - 2 * padding + K + output_padding
    assert out.shape == (N, Cout, OH, OW)

    # Tight check of the sub-pixel decomposition / fused BN / ReLU logic against a
    # reference that uses the same (bf16) matmul operand precision.
    ref_bf16 = _reference(x, weight, gamma, beta, stride=stride, padding=padding,
                          output_padding=output_padding, matmul_dtype=jnp.bfloat16)
    assert jnp.allclose(out, ref_bf16, rtol=2e-3, atol=2e-3), \
        float(jnp.max(jnp.abs(out - ref_bf16)))

    # Looser end-to-end check against full-f32 module semantics (kernel intentionally
    # feeds the MXU bf16 operands; accumulation and BN math stay f32).
    ref_f32 = _reference(x, weight, gamma, beta, stride=stride, padding=padding,
                         output_padding=output_padding)
    assert jnp.allclose(out, ref_f32, rtol=2e-2, atol=2e-2), \
        float(jnp.max(jnp.abs(out - ref_f32)))

    print("KERNEL_OK")
</pallas_src>

<mosaic_0001>
module attributes {stable_mosaic.version = 11 : i64} {
  func.func @_fused_kernel(%arg0: i32, %arg1: memref<32x256xbf16, #tpu.memory_space<vmem>>, %arg2: memref<256x512xbf16, #tpu.memory_space<vmem>>, %arg3: memref<512x128xf32, #tpu.memory_space<vmem>>, %arg4: memref<128x512xf32, #tpu.memory_space<vmem>>, %arg5: memref<1x128xf32, #tpu.memory_space<vmem>>, %arg6: memref<1x128xf32, #tpu.memory_space<vmem>>, %arg7: memref<32x512xf32, #tpu.memory_space<vmem>>) attributes {dimension_semantics = [#tpu.dimension_semantics<arbitrary>], iteration_bounds = array<i64: 1>, scalar_prefetch = 0 : i64, scratch_operands = 0 : i64, tpu.core_type = #tpu.core_type<tc>, window_params = [{pipeline_mode = #tpu.pipeline_mode<synchronous>, transform_indices = @transform_0, window_bounds = array<i64: 32, 256>}, {pipeline_mode = #tpu.pipeline_mode<synchronous>, transform_indices = @transform_1, window_bounds = array<i64: 256, 512>}, {pipeline_mode = #tpu.pipeline_mode<synchronous>, transform_indices = @transform_2, window_bounds = array<i64: 512, 128>}, {pipeline_mode = #tpu.pipeline_mode<synchronous>, transform_indices = @transform_3, window_bounds = array<i64: 128, 512>}, {pipeline_mode = #tpu.pipeline_mode<synchronous>, transform_indices = @transform_4, window_bounds = array<i64: 1, 128>}, {pipeline_mode = #tpu.pipeline_mode<synchronous>, transform_indices = @transform_5, window_bounds = array<i64: 1, 128>}, {pipeline_mode = #tpu.pipeline_mode<synchronous>, transform_indices = @transform_6, window_bounds = array<i64: 32, 512>}]} {
    %c0 = arith.constant 0 : index
    %c0_0 = arith.constant 0 : index
    %0 = vector.load %arg1[%c0, %c0_0] : memref<32x256xbf16, #tpu.memory_space<vmem>>, vector<32x256xbf16>
    %c0_1 = arith.constant 0 : index
    %c0_2 = arith.constant 0 : index
    %1 = vector.load %arg2[%c0_1, %c0_2] : memref<256x512xbf16, #tpu.memory_space<vmem>>, vector<256x512xbf16>
    %cst = arith.constant dense<0.000000e+00> : vector<32x512xf32>
    %2 = tpu.matmul %0, %1, %cst {dimension_numbers = #tpu.dot_dimension_numbers<[1], [0], [0], [1], [0, 0, 1, 1], [], []>} : vector<32x256xbf16>, vector<256x512xbf16>, vector<32x512xf32> -> vector<32x512xf32>
    %c0_3 = arith.constant 0 : index
    %c0_4 = arith.constant 0 : index
    %3 = vector.load %arg3[%c0_3, %c0_4] : memref<512x128xf32, #tpu.memory_space<vmem>>, vector<512x128xf32>
    %cst_5 = arith.constant dense<0.000000e+00> : vector<32x128xf32>
    %4 = tpu.matmul %2, %3, %cst_5 {dimension_numbers = #tpu.dot_dimension_numbers<[1], [0], [0], [1], [0, 0, 1, 1], [], []>} : vector<32x512xf32>, vector<512x128xf32>, vector<32x128xf32> -> vector<32x128xf32>
    %5 = arith.mulf %2, %2 : vector<32x512xf32>
    %cst_6 = arith.constant dense<0.000000e+00> : vector<32x128xf32>
    %6 = tpu.matmul %5, %3, %cst_6 {dimension_numbers = #tpu.dot_dimension_numbers<[1], [0], [0], [1], [0, 0, 1, 1], [], []>} : vector<32x512xf32>, vector<512x128xf32>, vector<32x128xf32> -> vector<32x128xf32>
    %cst_7 = arith.constant dense<0.000000e+00> : vector<128xf32>
    %7 = vector.multi_reduction <add>, %4, %cst_7 [0] : vector<32x128xf32> to vector<128xf32>
    %8 = vector.shape_cast %7 : vector<128xf32> to vector<1x128xf32>
    %cst_8 = arith.constant 4.8828125E-4 : f32
    %9 = vector.broadcast %cst_8 : f32 to vector<1x128xf32>
    %10 = arith.mulf %8, %9 : vector<1x128xf32>
    %cst_9 = arith.constant dense<0.000000e+00> : vector<128xf32>
    %11 = vector.multi_reduction <add>, %6, %cst_9 [0] : vector<32x128xf32> to vector<128xf32>
    %12 = vector.shape_cast %11 : vector<128xf32> to vector<1x128xf32>
    %cst_10 = arith.constant 4.8828125E-4 : f32
    %13 = vector.broadcast %cst_10 : f32 to vector<1x128xf32>
    %14 = arith.mulf %12, %13 : vector<1x128xf32>
    %15 = arith.mulf %10, %10 : vector<1x128xf32>
    %16 = arith.subf %14, %15 : vector<1x128xf32>
    %cst_11 = arith.constant 0.000000e+00 : f32
    %17 = vector.broadcast %cst_11 : f32 to vector<1x128xf32>
    %18 = arith.maximumf %16, %17 : vector<1x128xf32>
    %cst_12 = arith.constant 1.000000e-03 : f32
    %19 = vector.broadcast %cst_12 : f32 to vector<1x128xf32>
    %20 = arith.addf %18, %19 : vector<1x128xf32>
    %21 = math.rsqrt %20 : vector<1x128xf32>
    %c0_13 = arith.constant 0 : index
    %c0_14 = arith.constant 0 : index
    %22 = vector.load %arg5[%c0_13, %c0_14] : memref<1x128xf32, #tpu.memory_space<vmem>>, vector<1x128xf32>
    %23 = arith.mulf %21, %22 : vector<1x128xf32>
    %c0_15 = arith.constant 0 : index
    %c0_16 = arith.constant 0 : index
    %24 = vector.load %arg6[%c0_15, %c0_16] : memref<1x128xf32, #tpu.memory_space<vmem>>, vector<1x128xf32>
    %25 = arith.mulf %10, %23 : vector<1x128xf32>
    %26 = arith.subf %24, %25 : vector<1x128xf32>
    %c0_17 = arith.constant 0 : index
    %c0_18 = arith.constant 0 : index
    %27 = vector.load %arg4[%c0_17, %c0_18] : memref<128x512xf32, #tpu.memory_space<vmem>>, vector<128x512xf32>
    %cst_19 = arith.constant dense<0.000000e+00> : vector<1x512xf32>
    %28 = tpu.matmul %23, %27, %cst_19 {dimension_numbers = #tpu.dot_dimension_numbers<[1], [0], [0], [1], [0, 0, 1, 1], [], []>} : vector<1x128xf32>, vector<128x512xf32>, vector<1x512xf32> -> vector<1x512xf32>
    %cst_20 = arith.constant dense<0.000000e+00> : vector<1x512xf32>
    %29 = tpu.matmul %26, %27, %cst_20 {dimension_numbers = #tpu.dot_dimension_numbers<[1], [0], [0], [1], [0, 0, 1, 1], [], []>} : vector<1x128xf32>, vector<128x512xf32>, vector<1x512xf32> -> vector<1x512xf32>
    %30 = vector.broadcast %28 : vector<1x512xf32> to vector<32x512xf32>
    %31 = arith.mulf %2, %30 : vector<32x512xf32>
    %32 = vector.broadcast %29 : vector<1x512xf32> to vector<32x512xf32>
    %33 = arith.addf %31, %32 : vector<32x512xf32>
    %cst_21 = arith.constant 0.000000e+00 : f32
    %34 = vector.broadcast %cst_21 : f32 to vector<32x512xf32>
    %35 = arith.maximumf %33, %34 : vector<32x512xf32>
    %c0_22 = arith.constant 0 : index
    %c0_23 = arith.constant 0 : index
    %36 = vector.load %arg7[%c0_22, %c0_23] : memref<32x512xf32, #tpu.memory_space<vmem>>, vector<32x512xf32>
    tpu.vector_store %arg7[%c0_22, %c0_23], %35 {strides = array<i32>} : memref<32x512xf32, #tpu.memory_space<vmem>>, vector<32x512xf32>,
    return
  }
  func.func @transform_0(%arg0: i32) -> (i32, i32) {
    %c0_i32 = arith.constant 0 : i32
    %c0_i32_0 = arith.constant 0 : i32
    %c0_i32_1 = arith.constant 0 : i32
    return %c0_i32, %c0_i32_0 : i32, i32
  }
  func.func @transform_1(%arg0: i32) -> (i32, i32) {
    %c0_i32 = arith.constant 0 : i32
    %c0_i32_0 = arith.constant 0 : i32
    %c0_i32_1 = arith.constant 0 : i32
    return %c0_i32, %c0_i32_0 : i32, i32
  }
  func.func @transform_2(%arg0: i32) -> (i32, i32) {
    %c0_i32 = arith.constant 0 : i32
    %c0_i32_0 = arith.constant 0 : i32
    %c0_i32_1 = arith.constant 0 : i32
    return %c0_i32, %c0_i32_0 : i32, i32
  }
  func.func @transform_3(%arg0: i32) -> (i32, i32) {
    %c0_i32 = arith.constant 0 : i32
    %c0_i32_0 = arith.constant 0 : i32
    %c0_i32_1 = arith.constant 0 : i32
    return %c0_i32, %c0_i32_0 : i32, i32
  }
  func.func @transform_4(%arg0: i32) -> (i32, i32) {
    %c0_i32 = arith.constant 0 : i32
    %c0_i32_0 = arith.constant 0 : i32
    %c0_i32_1 = arith.constant 0 : i32
    return %c0_i32, %c0_i32_0 : i32, i32
  }
  func.func @transform_5(%arg0: i32) -> (i32, i32) {
    %c0_i32 = arith.constant 0 : i32
    %c0_i32_0 = arith.constant 0 : i32
    %c0_i32_1 = arith.constant 0 : i32
    return %c0_i32, %c0_i32_0 : i32, i32
  }
  func.func @transform_6(%arg0: i32) -> (i32, i32) {
    %c0_i32 = arith.constant 0 : i32
    %c0_i32_0 = arith.constant 0 : i32
    %c0_i32_1 = arith.constant 0 : i32
    return %c0_i32, %c0_i32_0 : i32, i32
  }
}

</mosaic_0001>

<llo_original>
// kernel: basic_conv_transpose2d.1
$region0: #{basic_conv_transpose2d.1}
  #allocation0 [shape = 'u32[]', space=smem, size = 0x4, offset = 0x4, fixed_abs, tag = 'smem constant byte address 0x4 - core index']
  #allocation1 [shape = 'u32[72,128]{1,0:T(1,128)}', space=vmem, size = 0x9000, scoped, tag = 'internal scratch']
  %s0 = inlined_call_operand.vmem [shape: bf16[32,256], index: 0, kind: input, shape index: {}]
  %s1 = inlined_call_operand.vmem [shape: bf16[256,512], index: 1, kind: input, shape index: {}]
  %s2 = inlined_call_operand.vmem [shape: f32[512,128], index: 2, kind: input, shape index: {}]
  %s3 = inlined_call_operand.vmem [shape: f32[128,512], index: 3, kind: input, shape index: {}]
  %s4 = inlined_call_operand.vmem [shape: f32[1,128], index: 4, kind: input, shape index: {}]
  %s5 = inlined_call_operand.vmem [shape: f32[1,128], index: 5, kind: input, shape index: {}]
  %s6 = inlined_call_operand.vmem [shape: f32[32,512], index: 6, kind: output, shape index: {}]
  %s7 = sld [smem:[#allocation0]]
  $region34: #{basic_conv_transpose2d.1} parent=0
    _
  %s9 = ssub.s32 1, %s7
  %s10 = scalar_select 0, %s9, %s7
  // Predicated region
  $region2: #{basic_conv_transpose2d.1} parent=0 // pred_check
    _
  $region3: #{basic_conv_transpose2d.1} parent=0 // pred_check_branch
    %12 = sbr.rel (0) target = $region5
  $region4: #{basic_conv_transpose2d.1} parent=0 // pred_region
    _
  $region5: #{basic_conv_transpose2d.1} parent=0 // pred_fallthru
    _
  // Predicated region
  $region6: #{basic_conv_transpose2d.1} parent=0 // pred_check
    _
  $region7: #{basic_conv_transpose2d.1} parent=0 // pred_check_branch
    %14 = sbr.rel (0) target = $region9
  $region8: #{basic_conv_transpose2d.1} parent=0 // pred_region
    _
  $region9: #{basic_conv_transpose2d.1} parent=0 // pred_fallthru
    _
  // Predicated region
  $region10: #{basic_conv_transpose2d.1} parent=0 // pred_check
    _
  $region11: #{basic_conv_transpose2d.1} parent=0 // pred_check_branch
    %16 = sbr.rel (0) target = $region13
  $region12: #{basic_conv_transpose2d.1} parent=0 // pred_region
    _
  $region13: #{basic_conv_transpose2d.1} parent=0 // pred_fallthru
    _
  // Predicated region
  $region14: #{basic_conv_transpose2d.1} parent=0 // pred_check
    _
  $region15: #{basic_conv_transpose2d.1} parent=0 // pred_check_branch
    %18 = sbr.rel (0) target = $region17
  $region16: #{basic_conv_transpose2d.1} parent=0 // pred_region
    _
  $region17: #{basic_conv_transpose2d.1} parent=0 // pred_fallthru
    _
  // Predicated region
  $region18: #{basic_conv_transpose2d.1} parent=0 // pred_check
    _
  $region19: #{basic_conv_transpose2d.1} parent=0 // pred_check_branch
    %20 = sbr.rel (0) target = $region21
  $region20: #{basic_conv_transpose2d.1} parent=0 // pred_region
    _
  $region21: #{basic_conv_transpose2d.1} parent=0 // pred_fallthru
    _
  // Predicated region
  $region22: #{basic_conv_transpose2d.1} parent=0 // pred_check
    _
  $region23: #{basic_conv_transpose2d.1} parent=0 // pred_check_branch
    %22 = sbr.rel (0) target = $region25
  $region24: #{basic_conv_transpose2d.1} parent=0 // pred_region
    _
  $region25: #{basic_conv_transpose2d.1} parent=0 // pred_fallthru
    _
  %v23 = vld [vmem:[%s0] sm:$0xff]
  %v24 = vld [vmem:[%s0 + $0x8] sm:$0xff]
  %v25 = vld [vmem:[%s0 + $0x10] sm:$0xff]
  %v26 = vld [vmem:[%s0 + $0x18] sm:$0xff]
  %v27 = vld [vmem:[%s1] sm:$0xff]
  %v28 = vld [vmem:[%s1 + $0x8] sm:$0xff]
  %v29 = vld [vmem:[%s1 + $0x10] sm:$0xff]
  %v30 = vld [vmem:[%s1 + $0x18] sm:$0xff]
  %v31 = vld [vmem:[%s1 + $0x20] sm:$0xff]
  %v32 = vld [vmem:[%s1 + $0x28] sm:$0xff]
  %v33 = vld [vmem:[%s1 + $0x30] sm:$0xff]
  %v34 = vld [vmem:[%s1 + $0x38] sm:$0xff]
  %v35 = vld [vmem:[%s1 + $0x40] sm:$0xff]
  %v36 = vld [vmem:[%s1 + $0x48] sm:$0xff]
  %v37 = vld [vmem:[%s1 + $0x50] sm:$0xff]
  %v38 = vld [vmem:[%s1 + $0x58] sm:$0xff]
  %v39 = vld [vmem:[%s1 + $0x60] sm:$0xff]
  %v40 = vld [vmem:[%s1 + $0x68] sm:$0xff]
  %v41 = vld [vmem:[%s1 + $0x70] sm:$0xff]
  %v42 = vld [vmem:[%s1 + $0x78] sm:$0xff]
  %v43 = vld [vmem:[%s1 + $0x80] sm:$0xff]
  %v44 = vld [vmem:[%s1 + $0x88] sm:$0xff]
  %v45 = vld [vmem:[%s1 + $0x90] sm:$0xff]
  %v46 = vld [vmem:[%s1 + $0x98] sm:$0xff]
  %v47 = vld [vmem:[%s1 + $0xa0] sm:$0xff]
  %v48 = vld [vmem:[%s1 + $0xa8] sm:$0xff]
  %v49 = vld [vmem:[%s1 + $0xb0] sm:$0xff]
  %v50 = vld [vmem:[%s1 + $0xb8] sm:$0xff]
  %v51 = vld [vmem:[%s1 + $0xc0] sm:$0xff]
  %v52 = vld [vmem:[%s1 + $0xc8] sm:$0xff]
  %v53 = vld [vmem:[%s1 + $0xd0] sm:$0xff]
  %v54 = vld [vmem:[%s1 + $0xd8] sm:$0xff]
  %v55 = vld [vmem:[%s1 + $0xe0] sm:$0xff]
  %v56 = vld [vmem:[%s1 + $0xe8] sm:$0xff]
  %v57 = vld [vmem:[%s1 + $0xf0] sm:$0xff]
  %v58 = vld [vmem:[%s1 + $0xf8] sm:$0xff]
  %v59 = vld [vmem:[%s1 + $0x100] sm:$0xff]
  %v60 = vld [vmem:[%s1 + $0x108] sm:$0xff]
  %v61 = vld [vmem:[%s1 + $0x110] sm:$0xff]
  %v62 = vld [vmem:[%s1 + $0x118] sm:$0xff]
  %v63 = vld [vmem:[%s1 + $0x120] sm:$0xff]
  %v64 = vld [vmem:[%s1 + $0x128] sm:$0xff]
  %v65 = vld [vmem:[%s1 + $0x130] sm:$0xff]
  %v66 = vld [vmem:[%s1 + $0x138] sm:$0xff]
  %v67 = vld [vmem:[%s1 + $0x140] sm:$0xff]
  %v68 = vld [vmem:[%s1 + $0x148] sm:$0xff]
  %v69 = vld [vmem:[%s1 + $0x150] sm:$0xff]
  %v70 = vld [vmem:[%s1 + $0x158] sm:$0xff]
  %v71 = vld [vmem:[%s1 + $0x160] sm:$0xff]
  %v72 = vld [vmem:[%s1 + $0x168] sm:$0xff]
  %v73 = vld [vmem:[%s1 + $0x170] sm:$0xff]
  %v74 = vld [vmem:[%s1 + $0x178] sm:$0xff]
  %v75 = vld [vmem:[%s1 + $0x180] sm:$0xff]
  %v76 = vld [vmem:[%s1 + $0x188] sm:$0xff]
  %v77 = vld [vmem:[%s1 + $0x190] sm:$0xff]
  %v78 = vld [vmem:[%s1 + $0x198] sm:$0xff]
  %v79 = vld [vmem:[%s1 + $0x1a0] sm:$0xff]
  %v80 = vld [vmem:[%s1 + $0x1a8] sm:$0xff]
  %v81 = vld [vmem:[%s1 + $0x1b0] sm:$0xff]
  %v82 = vld [vmem:[%s1 + $0x1b8] sm:$0xff]
  %v83 = vld [vmem:[%s1 + $0x1c0] sm:$0xff]
  %v84 = vld [vmem:[%s1 + $0x1c8] sm:$0xff]
  %v85 = vld [vmem:[%s1 + $0x1d0] sm:$0xff]
  %v86 = vld [vmem:[%s1 + $0x1d8] sm:$0xff]
  %v87 = vld [vmem:[%s1 + $0x1e0] sm:$0xff]
  %v88 = vld [vmem:[%s1 + $0x1e8] sm:$0xff]
  %v89 = vld [vmem:[%s1 + $0x1f0] sm:$0xff]
  %v90 = vld [vmem:[%s1 + $0x1f8] sm:$0xff]
  %v95 = vunpack.c.l.b16 %v23
  %v96 = vunpack.c.h.b16 %v23
  %v97 = vunpack.c.l.b16 %v24
  %v98 = vunpack.c.h.b16 %v24
  %v99 = vunpack.c.l.b16 %v25
  %v100 = vunpack.c.h.b16 %v25
  %v101 = vunpack.c.l.b16 %v26
  %v102 = vunpack.c.h.b16 %v26
  %v103 = vpack.c.b16 %v97, %v95
  %v104 = vpack.c.b16 %v98, %v96
  %v105 = vpack.c.b16 %v101, %v99
  %v106 = vpack.c.b16 %v102, %v100
  %v175 = vunpack.c.l.b16 %v27
  %v176 = vunpack.c.h.b16 %v27
  %v177 = vunpack.c.l.b16 %v28
  %v178 = vunpack.c.h.b16 %v28
  %v179 = vunpack.c.l.b16 %v29
  %v180 = vunpack.c.h.b16 %v29
  %v181 = vunpack.c.l.b16 %v30
  %v182 = vunpack.c.h.b16 %v30
  %v183 = vunpack.c.l.b16 %v31
  %v184 = vunpack.c.h.b16 %v31
  %v185 = vunpack.c.l.b16 %v32
  %v186 = vunpack.c.h.b16 %v32
  %v187 = vunpack.c.l.b16 %v33
  %v188 = vunpack.c.h.b16 %v33
  %v189 = vunpack.c.l.b16 %v34
  %v190 = vunpack.c.h.b16 %v34
  %v191 = vunpack.c.l.b16 %v35
  %v192 = vunpack.c.h.b16 %v35
  %v193 = vunpack.c.l.b16 %v36
  %v194 = vunpack.c.h.b16 %v36
  %v195 = vunpack.c.l.b16 %v37
  %v196 = vunpack.c.h.b16 %v37
  %v197 = vunpack.c.l.b16 %v38
  %v198 = vunpack.c.h.b16 %v38
  %v199 = vunpack.c.l.b16 %v39
  %v200 = vunpack.c.h.b16 %v39
  %v201 = vunpack.c.l.b16 %v40
  %v202 = vunpack.c.h.b16 %v40
  %v203 = vunpack.c.l.b16 %v41
  %v204 = vunpack.c.h.b16 %v41
  %v205 = vunpack.c.l.b16 %v42
  %v206 = vunpack.c.h.b16 %v42
  %v207 = vunpack.c.l.b16 %v43
  %v208 = vunpack.c.h.b16 %v43
  %v209 = vunpack.c.l.b16 %v44
  %v210 = vunpack.c.h.b16 %v44
  %v211 = vunpack.c.l.b16 %v45
  %v212 = vunpack.c.h.b16 %v45
  %v213 = vunpack.c.l.b16 %v46
  %v214 = vunpack.c.h.b16 %v46
  %v215 = vunpack.c.l.b16 %v47
  %v216 = vunpack.c.h.b16 %v47
  %v217 = vunpack.c.l.b16 %v48
  %v218 = vunpack.c.h.b16 %v48
  %v219 = vunpack.c.l.b16 %v49
  %v220 = vunpack.c.h.b16 %v49
  %v221 = vunpack.c.l.b16 %v50
  %v222 = vunpack.c.h.b16 %v50
  %v223 = vunpack.c.l.b16 %v51
  %v224 = vunpack.c.h.b16 %v51
  %v225 = vunpack.c.l.b16 %v52
  %v226 = vunpack.c.h.b16 %v52
  %v227 = vunpack.c.l.b16 %v53
  %v228 = vunpack.c.h.b16 %v53
  %v229 = vunpack.c.l.b16 %v54
  %v230 = vunpack.c.h.b16 %v54
  %v231 = vunpack.c.l.b16 %v55
  %v232 = vunpack.c.h.b16 %v55
  %v233 = vunpack.c.l.b16 %v56
  %v234 = vunpack.c.h.b16 %v56
  %v235 = vunpack.c.l.b16 %v57
  %v236 = vunpack.c.h.b16 %v57
  %v237 = vunpack.c.l.b16 %v58
  %v238 = vunpack.c.h.b16 %v58
  %v239 = vunpack.c.l.b16 %v59
  %v240 = vunpack.c.h.b16 %v59
  %v241 = vunpack.c.l.b16 %v60
  %v242 = vunpack.c.h.b16 %v60
  %v243 = vunpack.c.l.b16 %v61
  %v244 = vunpack.c.h.b16 %v61
  %v245 = vunpack.c.l.b16 %v62
  %v246 = vunpack.c.h.b16 %v62
  %v247 = vunpack.c.l.b16 %v63
  %v248 = vunpack.c.h.b16 %v63
  %v249 = vunpack.c.l.b16 %v64
  %v250 = vunpack.c.h.b16 %v64
  %v251 = vunpack.c.l.b16 %v65
  %v252 = vunpack.c.h.b16 %v65
  %v253 = vunpack.c.l.b16 %v66
  %v254 = vunpack.c.h.b16 %v66
  %v255 = vunpack.c.l.b16 %v67
  %v256 = vunpack.c.h.b16 %v67
  %v257 = vunpack.c.l.b16 %v68
  %v258 = vunpack.c.h.b16 %v68
  %v259 = vunpack.c.l.b16 %v69
  %v260 = vunpack.c.h.b16 %v69
  %v261 = vunpack.c.l.b16 %v70
  %v262 = vunpack.c.h.b16 %v70
  %v263 = vunpack.c.l.b16 %v71
  %v264 = vunpack.c.h.b16 %v71
  %v265 = vunpack.c.l.b16 %v72
  %v266 = vunpack.c.h.b16 %v72
  %v267 = vunpack.c.l.b16 %v73
  %v268 = vunpack.c.h.b16 %v73
  %v269 = vunpack.c.l.b16 %v74
  %v270 = vunpack.c.h.b16 %v74
  %v271 = vunpack.c.l.b16 %v75
  %v272 = vunpack.c.h.b16 %v75
  %v273 = vunpack.c.l.b16 %v76
  %v274 = vunpack.c.h.b16 %v76
  %v275 = vunpack.c.l.b16 %v77
  %v276 = vunpack.c.h.b16 %v77
  %v277 = vunpack.c.l.b16 %v78
  %v278 = vunpack.c.h.b16 %v78
  %v279 = vunpack.c.l.b16 %v79
  %v280 = vunpack.c.h.b16 %v79
  %v281 = vunpack.c.l.b16 %v80
  %v282 = vunpack.c.h.b16 %v80
  %v283 = vunpack.c.l.b16 %v81
  %v284 = vunpack.c.h.b16 %v81
  %v285 = vunpack.c.l.b16 %v82
  %v286 = vunpack.c.h.b16 %v82
  %v287 = vunpack.c.l.b16 %v83
  %v288 = vunpack.c.h.b16 %v83
  %v289 = vunpack.c.l.b16 %v84
  %v290 = vunpack.c.h.b16 %v84
  %v291 = vunpack.c.l.b16 %v85
  %v292 = vunpack.c.h.b16 %v85
  %v293 = vunpack.c.l.b16 %v86
  %v294 = vunpack.c.h.b16 %v86
  %v295 = vunpack.c.l.b16 %v87
  %v296 = vunpack.c.h.b16 %v87
  %v297 = vunpack.c.l.b16 %v88
  %v298 = vunpack.c.h.b16 %v88
  %v299 = vunpack.c.l.b16 %v89
  %v300 = vunpack.c.h.b16 %v89
  %v301 = vunpack.c.l.b16 %v90
  %v302 = vunpack.c.h.b16 %v90
  %v303 = vpack.c.b16 %v179, %v175
  %v304 = vpack.c.b16 %v180, %v176
  %v305 = vpack.c.b16 %v181, %v177
  %v306 = vpack.c.b16 %v182, %v178
  %v307 = vpack.c.b16 %v187, %v183
  %v308 = vpack.c.b16 %v188, %v184
  %v309 = vpack.c.b16 %v189, %v185
  %v310 = vpack.c.b16 %v190, %v186
  %v311 = vpack.c.b16 %v195, %v191
  %v312 = vpack.c.b16 %v196, %v192
  %v313 = vpack.c.b16 %v197, %v193
  %v314 = vpack.c.b16 %v198, %v194
  %v315 = vpack.c.b16 %v203, %v199
  %v316 = vpack.c.b16 %v204, %v200
  %v317 = vpack.c.b16 %v205, %v201
  %v318 = vpack.c.b16 %v206, %v202
  %v319 = vpack.c.b16 %v211, %v207
  %v320 = vpack.c.b16 %v212, %v208
  %v321 = vpack.c.b16 %v213, %v209
  %v322 = vpack.c.b16 %v214, %v210
  %v323 = vpack.c.b16 %v219, %v215
  %v324 = vpack.c.b16 %v220, %v216
  %v325 = vpack.c.b16 %v221, %v217
  %v326 = vpack.c.b16 %v222, %v218
  %v327 = vpack.c.b16 %v227, %v223
  %v328 = vpack.c.b16 %v228, %v224
  %v329 = vpack.c.b16 %v229, %v225
  %v330 = vpack.c.b16 %v230, %v226
  %v331 = vpack.c.b16 %v235, %v231
  %v332 = vpack.c.b16 %v236, %v232
  %v333 = vpack.c.b16 %v237, %v233
  %v334 = vpack.c.b16 %v238, %v234
  %v335 = vpack.c.b16 %v243, %v239
  %v336 = vpack.c.b16 %v244, %v240
  %v337 = vpack.c.b16 %v245, %v241
  %v338 = vpack.c.b16 %v246, %v242
  %v339 = vpack.c.b16 %v251, %v247
  %v340 = vpack.c.b16 %v252, %v248
  %v341 = vpack.c.b16 %v253, %v249
  %v342 = vpack.c.b16 %v254, %v250
  %v343 = vpack.c.b16 %v259, %v255
  %v344 = vpack.c.b16 %v260, %v256
  %v345 = vpack.c.b16 %v261, %v257
  %v346 = vpack.c.b16 %v262, %v258
  %v347 = vpack.c.b16 %v267, %v263
  %v348 = vpack.c.b16 %v268, %v264
  %v349 = vpack.c.b16 %v269, %v265
  %v350 = vpack.c.b16 %v270, %v266
  %v351 = vpack.c.b16 %v275, %v271
  %v352 = vpack.c.b16 %v276, %v272
  %v353 = vpack.c.b16 %v277, %v273
  %v354 = vpack.c.b16 %v278, %v274
  %v355 = vpack.c.b16 %v283, %v279
  %v356 = vpack.c.b16 %v284, %v280
  %v357 = vpack.c.b16 %v285, %v281
  %v358 = vpack.c.b16 %v286, %v282
  %v359 = vpack.c.b16 %v291, %v287
  %v360 = vpack.c.b16 %v292, %v288
  %v361 = vpack.c.b16 %v293, %v289
  %v362 = vpack.c.b16 %v294, %v290
  %v363 = vpack.c.b16 %v299, %v295
  %v364 = vpack.c.b16 %v300, %v296
  %v365 = vpack.c.b16 %v301, %v297
  %v366 = vpack.c.b16 %v302, %v298
  %431 = vmatpush.bf16.msra.mxu0 %v331
  %432 = vmatpush.bf16.msra.mxu0 %v327
  %433 = vmatpush.bf16.msra.mxu0 %v323
  %434 = vmatpush.bf16.msra.mxu0 %v319
  %435 = vmatpush.bf16.msra.mxu0 %v315
  %436 = vmatpush.bf16.msra.mxu0 %v311
  %437 = vmatpush.bf16.msra.mxu0 %v307
  %438 = vmatpush.bf16.msra.mxu0 %v303
  %439 = vmatmul.bf16.gmra.mxu0 %v103
  %v440 = vpop.f32.mrf.mxu0
  %v441 = vadd.f32 0.0, %v440
  %v442 = vpop.f32.mrf.mxu0
  %v443 = vadd.f32 0.0, %v442
  %444 = vmatmul.bf16.gmra.mxu0 %v105
  %v445 = vpop.f32.mrf.mxu0
  %v446 = vadd.f32 0.0, %v445
  %v447 = vpop.f32.mrf.mxu0
  %v448 = vadd.f32 0.0, %v447
  %449 = vdwg.mxu0
  %450 = vmatpush.bf16.msra.mxu0 %v363
  %451 = vmatpush.bf16.msra.mxu0 %v359
  %452 = vmatpush.bf16.msra.mxu0 %v355
  %453 = vmatpush.bf16.msra.mxu0 %v351
  %454 = vmatpush.bf16.msra.mxu0 %v347
  %455 = vmatpush.bf16.msra.mxu0 %v343
  %456 = vmatpush.bf16.msra.mxu0 %v339
  %457 = vmatpush.bf16.msra.mxu0 %v335
  %458 = vmatmul.bf16.gmra.mxu0 %v104
  %v459 = vpop.f32.mrf.mxu0
  %v460 = vadd.f32 %v441, %v459
  %v461 = vpop.f32.mrf.mxu0
  %v462 = vadd.f32 %v443, %v461
  %463 = vmatmul.bf16.gmra.mxu0 %v106
  %v464 = vpop.f32.mrf.mxu0
  %v465 = vadd.f32 %v446, %v464
  %v466 = vpop.f32.mrf.mxu0
  %v467 = vadd.f32 %v448, %v466
  %468 = vdwg.mxu0
  %469 = vmatpush.bf16.msra.mxu0 %v332
  %470 = vmatpush.bf16.msra.mxu0 %v328
  %471 = vmatpush.bf16.msra.mxu0 %v324
  %472 = vmatpush.bf16.msra.mxu0 %v320
  %473 = vmatpush.bf16.msra.mxu0 %v316
  %474 = vmatpush.bf16.msra.mxu0 %v312
  %475 = vmatpush.bf16.msra.mxu0 %v308
  %476 = vmatpush.bf16.msra.mxu0 %v304
  %477 = vmatmul.bf16.gmra.mxu0 %v103
  %v478 = vpop.f32.mrf.mxu0
  %v479 = vadd.f32 0.0, %v478
  %v480 = vpop.f32.mrf.mxu0
  %v481 = vadd.f32 0.0, %v480
  %482 = vmatmul.bf16.gmra.mxu0 %v105
  %v483 = vpop.f32.mrf.mxu0
  %v484 = vadd.f32 0.0, %v483
  %v485 = vpop.f32.mrf.mxu0
  %v486 = vadd.f32 0.0, %v485
  %487 = vdwg.mxu0
  %488 = vmatpush.bf16.msra.mxu0 %v364
  %489 = vmatpush.bf16.msra.mxu0 %v360
  %490 = vmatpush.bf16.msra.mxu0 %v356
  %491 = vmatpush.bf16.msra.mxu0 %v352
  %492 = vmatpush.bf16.msra.mxu0 %v348
  %493 = vmatpush.bf16.msra.mxu0 %v344
  %494 = vmatpush.bf16.msra.mxu0 %v340
  %495 = vmatpush.bf16.msra.mxu0 %v336
  %496 = vmatmul.bf16.gmra.mxu0 %v104
  %v497 = vpop.f32.mrf.mxu0
  %v498 = vadd.f32 %v479, %v497
  %v499 = vpop.f32.mrf.mxu0
  %v500 = vadd.f32 %v481, %v499
  %501 = vmatmul.bf16.gmra.mxu0 %v106
  %v502 = vpop.f32.mrf.mxu0
  %v503 = vadd.f32 %v484, %v502
  %v504 = vpop.f32.mrf.mxu0
  %v505 = vadd.f32 %v486, %v504
  %506 = vdwg.mxu0
  %507 = vmatpush.bf16.msra.mxu0 %v333
  %508 = vmatpush.bf16.msra.mxu0 %v329
  %509 = vmatpush.bf16.msra.mxu0 %v325
  %510 = vmatpush.bf16.msra.mxu0 %v321
  %511 = vmatpush.bf16.msra.mxu0 %v317
  %512 = vmatpush.bf16.msra.mxu0 %v313
  %513 = vmatpush.bf16.msra.mxu0 %v309
  %514 = vmatpush.bf16.msra.mxu0 %v305
  %515 = vmatmul.bf16.gmra.mxu0 %v103
  %v516 = vpop.f32.mrf.mxu0
  %v517 = vadd.f32 0.0, %v516
  %v518 = vpop.f32.mrf.mxu0
  %v519 = vadd.f32 0.0, %v518
  %520 = vmatmul.bf16.gmra.mxu0 %v105
  %v521 = vpop.f32.mrf.mxu0
  %v522 = vadd.f32 0.0, %v521
  %v523 = vpop.f32.mrf.mxu0
  %v524 = vadd.f32 0.0, %v523
  %525 = vdwg.mxu0
  %526 = vmatpush.bf16.msra.mxu0 %v365
  %527 = vmatpush.bf16.msra.mxu0 %v361
  %528 = vmatpush.bf16.msra.mxu0 %v357
  %529 = vmatpush.bf16.msra.mxu0 %v353
  %530 = vmatpush.bf16.msra.mxu0 %v349
  %531 = vmatpush.bf16.msra.mxu0 %v345
  %532 = vmatpush.bf16.msra.mxu0 %v341
  %533 = vmatpush.bf16.msra.mxu0 %v337
  %534 = vmatmul.bf16.gmra.mxu0 %v104
  %v535 = vpop.f32.mrf.mxu0
  %v536 = vadd.f32 %v517, %v535
  %v537 = vpop.f32.mrf.mxu0
  %v538 = vadd.f32 %v519, %v537
  %539 = vmatmul.bf16.gmra.mxu0 %v106
  %v540 = vpop.f32.mrf.mxu0
  %v541 = vadd.f32 %v522, %v540
  %v542 = vpop.f32.mrf.mxu0
  %v543 = vadd.f32 %v524, %v542
  %544 = vdwg.mxu0
  %545 = vmatpush.bf16.msra.mxu0 %v334
  %546 = vmatpush.bf16.msra.mxu0 %v330
  %547 = vmatpush.bf16.msra.mxu0 %v326
  %548 = vmatpush.bf16.msra.mxu0 %v322
  %549 = vmatpush.bf16.msra.mxu0 %v318
  %550 = vmatpush.bf16.msra.mxu0 %v314
  %551 = vmatpush.bf16.msra.mxu0 %v310
  %552 = vmatpush.bf16.msra.mxu0 %v306
  %553 = vmatmul.bf16.gmra.mxu0 %v103
  %v554 = vpop.f32.mrf.mxu0
  %v555 = vadd.f32 0.0, %v554
  %v556 = vpop.f32.mrf.mxu0
  %v557 = vadd.f32 0.0, %v556
  %558 = vmatmul.bf16.gmra.mxu0 %v105
  %v559 = vpop.f32.mrf.mxu0
  %v560 = vadd.f32 0.0, %v559
  %v561 = vpop.f32.mrf.mxu0
  %v562 = vadd.f32 0.0, %v561
  %563 = vdwg.mxu0
  %564 = vmatpush.bf16.msra.mxu0 %v366
  %565 = vmatpush.bf16.msra.mxu0 %v362
  %566 = vmatpush.bf16.msra.mxu0 %v358
  %567 = vmatpush.bf16.msra.mxu0 %v354
  %568 = vmatpush.bf16.msra.mxu0 %v350
  %569 = vmatpush.bf16.msra.mxu0 %v346
  %570 = vmatpush.bf16.msra.mxu0 %v342
  %571 = vmatpush.bf16.msra.mxu0 %v338
  %572 = vmatmul.bf16.gmra.mxu0 %v104
  %v573 = vpop.f32.mrf.mxu0
  %v574 = vadd.f32 %v555, %v573
  %v575 = vpop.f32.mrf.mxu0
  %v576 = vadd.f32 %v557, %v575
  %577 = vmatmul.bf16.gmra.mxu0 %v106
  %v578 = vpop.f32.mrf.mxu0
  %v579 = vadd.f32 %v560, %v578
  %v580 = vpop.f32.mrf.mxu0
  %v581 = vadd.f32 %v562, %v580
  %582 = vdwg.mxu0
  %v583 = vld [vmem:[%s2] sm:$0xff]
  %v584 = vld [vmem:[%s2 + $0x8] sm:$0xff]
  %v585 = vld [vmem:[%s2 + $0x10] sm:$0xff]
  %v586 = vld [vmem:[%s2 + $0x18] sm:$0xff]
  %v587 = vld [vmem:[%s2 + $0x20] sm:$0xff]
  %v588 = vld [vmem:[%s2 + $0x28] sm:$0xff]
  %v589 = vld [vmem:[%s2 + $0x30] sm:$0xff]
  %v590 = vld [vmem:[%s2 + $0x38] sm:$0xff]
  %v591 = vld [vmem:[%s2 + $0x40] sm:$0xff]
  %v592 = vld [vmem:[%s2 + $0x48] sm:$0xff]
  %v593 = vld [vmem:[%s2 + $0x50] sm:$0xff]
  %v594 = vld [vmem:[%s2 + $0x58] sm:$0xff]
  %v595 = vld [vmem:[%s2 + $0x60] sm:$0xff]
  %v596 = vld [vmem:[%s2 + $0x68] sm:$0xff]
  %v597 = vld [vmem:[%s2 + $0x70] sm:$0xff]
  %v598 = vld [vmem:[%s2 + $0x78] sm:$0xff]
  %v599 = vld [vmem:[%s2 + $0x80] sm:$0xff]
  %v600 = vld [vmem:[%s2 + $0x88] sm:$0xff]
  %v601 = vld [vmem:[%s2 + $0x90] sm:$0xff]
  %v602 = vld [vmem:[%s2 + $0x98] sm:$0xff]
  %v603 = vld [vmem:[%s2 + $0xa0] sm:$0xff]
  %v604 = vld [vmem:[%s2 + $0xa8] sm:$0xff]
  %v605 = vld [vmem:[%s2 + $0xb0] sm:$0xff]
  %v606 = vld [vmem:[%s2 + $0xb8] sm:$0xff]
  %v607 = vld [vmem:[%s2 + $0xc0] sm:$0xff]
  %v608 = vld [vmem:[%s2 + $0xc8] sm:$0xff]
  %v609 = vld [vmem:[%s2 + $0xd0] sm:$0xff]
  %v610 = vld [vmem:[%s2 + $0xd8] sm:$0xff]
  %v611 = vld [vmem:[%s2 + $0xe0] sm:$0xff]
  %v612 = vld [vmem:[%s2 + $0xe8] sm:$0xff]
  %v613 = vld [vmem:[%s2 + $0xf0] sm:$0xff]
  %v614 = vld [vmem:[%s2 + $0xf8] sm:$0xff]
  %v615 = vld [vmem:[%s2 + $0x100] sm:$0xff]
  %v616 = vld [vmem:[%s2 + $0x108] sm:$0xff]
  %v617 = vld [vmem:[%s2 + $0x110] sm:$0xff]
  %v618 = vld [vmem:[%s2 + $0x118] sm:$0xff]
  %v619 = vld [vmem:[%s2 + $0x120] sm:$0xff]
  %v620 = vld [vmem:[%s2 + $0x128] sm:$0xff]
  %v621 = vld [vmem:[%s2 + $0x130] sm:$0xff]
  %v622 = vld [vmem:[%s2 + $0x138] sm:$0xff]
  %v623 = vld [vmem:[%s2 + $0x140] sm:$0xff]
  %v624 = vld [vmem:[%s2 + $0x148] sm:$0xff]
  %v625 = vld [vmem:[%s2 + $0x150] sm:$0xff]
  %v626 = vld [vmem:[%s2 + $0x158] sm:$0xff]
  %v627 = vld [vmem:[%s2 + $0x160] sm:$0xff]
  %v628 = vld [vmem:[%s2 + $0x168] sm:$0xff]
  %v629 = vld [vmem:[%s2 + $0x170] sm:$0xff]
  %v630 = vld [vmem:[%s2 + $0x178] sm:$0xff]
  %v631 = vld [vmem:[%s2 + $0x180] sm:$0xff]
  %v632 = vld [vmem:[%s2 + $0x188] sm:$0xff]
  %v633 = vld [vmem:[%s2 + $0x190] sm:$0xff]
  %v634 = vld [vmem:[%s2 + $0x198] sm:$0xff]
  %v635 = vld [vmem:[%s2 + $0x1a0] sm:$0xff]
  %v636 = vld [vmem:[%s2 + $0x1a8] sm:$0xff]
  %v637 = vld [vmem:[%s2 + $0x1b0] sm:$0xff]
  %v638 = vld [vmem:[%s2 + $0x1b8] sm:$0xff]
  %v639 = vld [vmem:[%s2 + $0x1c0] sm:$0xff]
  %v640 = vld [vmem:[%s2 + $0x1c8] sm:$0xff]
  %v641 = vld [vmem:[%s2 + $0x1d0] sm:$0xff]
  %v642 = vld [vmem:[%s2 + $0x1d8] sm:$0xff]
  %v643 = vld [vmem:[%s2 + $0x1e0] sm:$0xff]
  %v644 = vld [vmem:[%s2 + $0x1e8] sm:$0xff]
  %v645 = vld [vmem:[%s2 + $0x1f0] sm:$0xff]
  %v646 = vld [vmem:[%s2 + $0x1f8] sm:$0xff]
  %647 = vmatpush.msra.mxu0 %v598
  %648 = vmatpush.msra.mxu0 %v597
  %649 = vmatpush.msra.mxu0 %v596
  %650 = vmatpush.msra.mxu0 %v595
  %651 = vmatpush.msra.mxu0 %v594
  %652 = vmatpush.msra.mxu0 %v593
  %653 = vmatpush.msra.mxu0 %v592
  %654 = vmatpush.msra.mxu0 %v591
  %655 = vmatpush.msra.mxu0 %v590
  %656 = vmatpush.msra.mxu0 %v589
  %657 = vmatpush.msra.mxu0 %v588
  %658 = vmatpush.msra.mxu0 %v587
  %659 = vmatpush.msra.mxu0 %v586
  %660 = vmatpush.msra.mxu0 %v585
  %661 = vmatpush.msra.mxu0 %v584
  %662 = vmatpush.msra.mxu0 %v583
  %663 = vmatmul.f32.gmra.mxu0 %v460
  %v664 = vpop.f32.mrf.mxu0
  %v665 = vadd.f32 0.0, %v664
  %666 = vmatmul.f32.gmra.mxu0 %v462
  %v667 = vpop.f32.mrf.mxu0
  %v668 = vadd.f32 0.0, %v667
  %669 = vmatmul.f32.gmra.mxu0 %v465
  %v670 = vpop.f32.mrf.mxu0
  %v671 = vadd.f32 0.0, %v670
  %672 = vmatmul.f32.gmra.mxu0 %v467
  %v673 = vpop.f32.mrf.mxu0
  %v674 = vadd.f32 0.0, %v673
  %675 = vdwg.mxu0
  %676 = vmatpush.msra.mxu0 %v614
  %677 = vmatpush.msra.mxu0 %v613
  %678 = vmatpush.msra.mxu0 %v612
  %679 = vmatpush.msra.mxu0 %v611
  %680 = vmatpush.msra.mxu0 %v610
  %681 = vmatpush.msra.mxu0 %v609
  %682 = vmatpush.msra.mxu0 %v608
  %683 = vmatpush.msra.mxu0 %v607
  %684 = vmatpush.msra.mxu0 %v606
  %685 = vmatpush.msra.mxu0 %v605
  %686 = vmatpush.msra.mxu0 %v604
  %687 = vmatpush.msra.mxu0 %v603
  %688 = vmatpush.msra.mxu0 %v602
  %689 = vmatpush.msra.mxu0 %v601
  %690 = vmatpush.msra.mxu0 %v600
  %691 = vmatpush.msra.mxu0 %v599
  %692 = vmatmul.f32.gmra.mxu0 %v498
  %v693 = vpop.f32.mrf.mxu0
  %v694 = vadd.f32 %v665, %v693
  %695 = vmatmul.f32.gmra.mxu0 %v500
  %v696 = vpop.f32.mrf.mxu0
  %v697 = vadd.f32 %v668, %v696
  %698 = vmatmul.f32.gmra.mxu0 %v503
  %v699 = vpop.f32.mrf.mxu0
  %v700 = vadd.f32 %v671, %v699
  %701 = vmatmul.f32.gmra.mxu0 %v505
  %v702 = vpop.f32.mrf.mxu0
  %v703 = vadd.f32 %v674, %v702
  %704 = vdwg.mxu0
  %705 = vmatpush.msra.mxu0 %v630
  %706 = vmatpush.msra.mxu0 %v629
  %707 = vmatpush.msra.mxu0 %v628
  %708 = vmatpush.msra.mxu0 %v627
  %709 = vmatpush.msra.mxu0 %v626
  %710 = vmatpush.msra.mxu0 %v625
  %711 = vmatpush.msra.mxu0 %v624
  %712 = vmatpush.msra.mxu0 %v623
  %713 = vmatpush.msra.mxu0 %v622
  %714 = vmatpush.msra.mxu0 %v621
  %715 = vmatpush.msra.mxu0 %v620
  %716 = vmatpush.msra.mxu0 %v619
  %717 = vmatpush.msra.mxu0 %v618
  %718 = vmatpush.msra.mxu0 %v617
  %719 = vmatpush.msra.mxu0 %v616
  %720 = vmatpush.msra.mxu0 %v615
  %721 = vmatmul.f32.gmra.mxu0 %v536
  %v722 = vpop.f32.mrf.mxu0
  %v723 = vadd.f32 %v694, %v722
  %724 = vmatmul.f32.gmra.mxu0 %v538
  %v725 = vpop.f32.mrf.mxu0
  %v726 = vadd.f32 %v697, %v725
  %727 = vmatmul.f32.gmra.mxu0 %v541
  %v728 = vpop.f32.mrf.mxu0
  %v729 = vadd.f32 %v700, %v728
  %730 = vmatmul.f32.gmra.mxu0 %v543
  %v731 = vpop.f32.mrf.mxu0
  %v732 = vadd.f32 %v703, %v731
  %733 = vdwg.mxu0
  %734 = vmatpush.msra.mxu0 %v646
  %735 = vmatpush.msra.mxu0 %v645
  %736 = vmatpush.msra.mxu0 %v644
  %737 = vmatpush.msra.mxu0 %v643
  %738 = vmatpush.msra.mxu0 %v642
  %739 = vmatpush.msra.mxu0 %v641
  %740 = vmatpush.msra.mxu0 %v640
  %741 = vmatpush.msra.mxu0 %v639
  %742 = vmatpush.msra.mxu0 %v638
  %743 = vmatpush.msra.mxu0 %v637
  %744 = vmatpush.msra.mxu0 %v636
  %745 = vmatpush.msra.mxu0 %v635
  %746 = vmatpush.msra.mxu0 %v634
  %747 = vmatpush.msra.mxu0 %v633
  %748 = vmatpush.msra.mxu0 %v632
  %749 = vmatpush.msra.mxu0 %v631
  %750 = vmatmul.f32.gmra.mxu0 %v574
  %v751 = vpop.f32.mrf.mxu0
  %v752 = vadd.f32 %v723, %v751
  %753 = vmatmul.f32.gmra.mxu0 %v576
  %v754 = vpop.f32.mrf.mxu0
  %v755 = vadd.f32 %v726, %v754
  %756 = vmatmul.f32.gmra.mxu0 %v579
  %v757 = vpop.f32.mrf.mxu0
  %v758 = vadd.f32 %v729, %v757
  %759 = vmatmul.f32.gmra.mxu0 %v581
  %v760 = vpop.f32.mrf.mxu0
  %v761 = vadd.f32 %v732, %v760
  %762 = vdwg.mxu0
  %v763 = vmul.f32 %v460, %v460
  %v764 = vmul.f32 %v498, %v498
  %v765 = vmul.f32 %v536, %v536
  %v766 = vmul.f32 %v574, %v574
  %v767 = vmul.f32 %v462, %v462
  %v768 = vmul.f32 %v500, %v500
  %v769 = vmul.f32 %v538, %v538
  %v770 = vmul.f32 %v576, %v576
  %v771 = vmul.f32 %v465, %v465
  %v772 = vmul.f32 %v503, %v503
  %v773 = vmul.f32 %v541, %v541
  %v774 = vmul.f32 %v579, %v579
  %v775 = vmul.f32 %v467, %v467
  %v776 = vmul.f32 %v505, %v505
  %v777 = vmul.f32 %v543, %v543
  %v778 = vmul.f32 %v581, %v581
  %779 = vmatpush.msra.mxu0 %v598
  %780 = vmatpush.msra.mxu0 %v597
  %781 = vmatpush.msra.mxu0 %v596
  %782 = vmatpush.msra.mxu0 %v595
  %783 = vmatpush.msra.mxu0 %v594
  %784 = vmatpush.msra.mxu0 %v593
  %785 = vmatpush.msra.mxu0 %v592
  %786 = vmatpush.msra.mxu0 %v591
  %787 = vmatpush.msra.mxu0 %v590
  %788 = vmatpush.msra.mxu0 %v589
  %789 = vmatpush.msra.mxu0 %v588
  %790 = vmatpush.msra.mxu0 %v587
  %791 = vmatpush.msra.mxu0 %v586
  %792 = vmatpush.msra.mxu0 %v585
  %793 = vmatpush.msra.mxu0 %v584
  %794 = vmatpush.msra.mxu0 %v583
  %795 = vmatmul.f32.gmra.mxu0 %v763
  %v796 = vpop.f32.mrf.mxu0
  %v797 = vadd.f32 0.0, %v796
  %798 = vmatmul.f32.gmra.mxu0 %v767
  %v799 = vpop.f32.mrf.mxu0
  %v800 = vadd.f32 0.0, %v799
  %801 = vmatmul.f32.gmra.mxu0 %v771
  %v802 = vpop.f32.mrf.mxu0
  %v803 = vadd.f32 0.0, %v802
  %804 = vmatmul.f32.gmra.mxu0 %v775
  %v805 = vpop.f32.mrf.mxu0
  %v806 = vadd.f32 0.0, %v805
  %807 = vdwg.mxu0
  %808 = vmatpush.msra.mxu0 %v614
  %809 = vmatpush.msra.mxu0 %v613
  %810 = vmatpush.msra.mxu0 %v612
  %811 = vmatpush.msra.mxu0 %v611
  %812 = vmatpush.msra.mxu0 %v610
  %813 = vmatpush.msra.mxu0 %v609
  %814 = vmatpush.msra.mxu0 %v608
  %815 = vmatpush.msra.mxu0 %v607
  %816 = vmatpush.msra.mxu0 %v606
  %817 = vmatpush.msra.mxu0 %v605
  %818 = vmatpush.msra.mxu0 %v604
  %819 = vmatpush.msra.mxu0 %v603
  %820 = vmatpush.msra.mxu0 %v602
  %821 = vmatpush.msra.mxu0 %v601
  %822 = vmatpush.msra.mxu0 %v600
  %823 = vmatpush.msra.mxu0 %v599
  %824 = vmatmul.f32.gmra.mxu0 %v764
  %v825 = vpop.f32.mrf.mxu0
  %v826 = vadd.f32 %v797, %v825
  %827 = vmatmul.f32.gmra.mxu0 %v768
  %v828 = vpop.f32.mrf.mxu0
  %v829 = vadd.f32 %v800, %v828
  %830 = vmatmul.f32.gmra.mxu0 %v772
  %v831 = vpop.f32.mrf.mxu0
  %v832 = vadd.f32 %v803, %v831
  %833 = vmatmul.f32.gmra.mxu0 %v776
  %v834 = vpop.f32.mrf.mxu0
  %v835 = vadd.f32 %v806, %v834
  %836 = vdwg.mxu0
  %837 = vmatpush.msra.mxu0 %v630
  %838 = vmatpush.msra.mxu0 %v629
  %839 = vmatpush.msra.mxu0 %v628
  %840 = vmatpush.msra.mxu0 %v627
  %841 = vmatpush.msra.mxu0 %v626
  %842 = vmatpush.msra.mxu0 %v625
  %843 = vmatpush.msra.mxu0 %v624
  %844 = vmatpush.msra.mxu0 %v623
  %845 = vmatpush.msra.mxu0 %v622
  %846 = vmatpush.msra.mxu0 %v621
  %847 = vmatpush.msra.mxu0 %v620
  %848 = vmatpush.msra.mxu0 %v619
  %849 = vmatpush.msra.mxu0 %v618
  %850 = vmatpush.msra.mxu0 %v617
  %851 = vmatpush.msra.mxu0 %v616
  %852 = vmatpush.msra.mxu0 %v615
  %853 = vmatmul.f32.gmra.mxu0 %v765
  %v854 = vpop.f32.mrf.mxu0
  %v855 = vadd.f32 %v826, %v854
  %856 = vmatmul.f32.gmra.mxu0 %v769
  %v857 = vpop.f32.mrf.mxu0
  %v858 = vadd.f32 %v829, %v857
  %859 = vmatmul.f32.gmra.mxu0 %v773
  %v860 = vpop.f32.mrf.mxu0
  %v861 = vadd.f32 %v832, %v860
  %862 = vmatmul.f32.gmra.mxu0 %v777
  %v863 = vpop.f32.mrf.mxu0
  %v864 = vadd.f32 %v835, %v863
  %865 = vdwg.mxu0
  %866 = vmatpush.msra.mxu0 %v646
  %867 = vmatpush.msra.mxu0 %v645
  %868 = vmatpush.msra.mxu0 %v644
  %869 = vmatpush.msra.mxu0 %v643
  %870 = vmatpush.msra.mxu0 %v642
  %871 = vmatpush.msra.mxu0 %v641
  %872 = vmatpush.msra.mxu0 %v640
  %873 = vmatpush.msra.mxu0 %v639
  %874 = vmatpush.msra.mxu0 %v638
  %875 = vmatpush.msra.mxu0 %v637
  %876 = vmatpush.msra.mxu0 %v636
  %877 = vmatpush.msra.mxu0 %v635
  %878 = vmatpush.msra.mxu0 %v634
  %879 = vmatpush.msra.mxu0 %v633
  %880 = vmatpush.msra.mxu0 %v632
  %881 = vmatpush.msra.mxu0 %v631
  %882 = vmatmul.f32.gmra.mxu0 %v766
  %v883 = vpop.f32.mrf.mxu0
  %v884 = vadd.f32 %v855, %v883
  %885 = vmatmul.f32.gmra.mxu0 %v770
  %v886 = vpop.f32.mrf.mxu0
  %v887 = vadd.f32 %v858, %v886
  %888 = vmatmul.f32.gmra.mxu0 %v774
  %v889 = vpop.f32.mrf.mxu0
  %v890 = vadd.f32 %v861, %v889
  %891 = vmatmul.f32.gmra.mxu0 %v778
  %v892 = vpop.f32.mrf.mxu0
  %v893 = vadd.f32 %v864, %v892
  %894 = vdwg.mxu0
  %v895 = vadd.f32 %v752, %v755
  %v896 = vadd.f32 %v895, %v758
  %v897 = vadd.f32 %v896, %v761
  %v898 = vrot.slane %v897, 4
  %v899 = vadd.f32 %v897, %v898
  %v900 = vrot.slane %v899, 2
  %v901 = vadd.f32 %v899, %v900
  %v902 = vrot.slane %v901, 1
  %v903 = vadd.f32 %v901, %v902
  %v904 = vmul.f32 %v903, 0.00048828125
  %v905 = vadd.f32 %v884, %v887
  %v906 = vadd.f32 %v905, %v890
  %v907 = vadd.f32 %v906, %v893
  %v908 = vrot.slane %v907, 4
  %v909 = vadd.f32 %v907, %v908
  %v910 = vrot.slane %v909, 2
  %v911 = vadd.f32 %v909, %v910
  %v912 = vrot.slane %v911, 1
  %v913 = vadd.f32 %v911, %v912
  %v914 = vmul.f32 %v913, 0.00048828125
  %v915 = vmul.f32 %v904, %v904
  %v916 = vsub.f32 %v914, %v915
  %v917 = vmax.f32 %v916, 0.0
  %v918 = vadd.f32 %v917, 0.001
  %v919 = vrsqrt.pop %v918
  %v920 = vmul.f32 %v919, %v918
  %v921 = vmul.f32 %v920, %v919
  %v922 = vmul.f32 0.5, %v921
  %v923 = vsub.f32 1.5, %v922
  %v924 = vmul.f32 %v919, %v923
  %vm925 = vweird.f32 %v918
  %vm926 = vweird.f32 %v919
  %vm927 = vmor %vm925, %vm926
  %v928 = vsel %vm927, %v919, %v924
  %v929 = vld [vmem:[%s4] sm:$0x1]
  %v930 = vmul.f32 %v928, %v929
  %v931 = vld [vmem:[%s5] sm:$0x1]
  %v932 = vmul.f32 %v904, %v930
  %v933 = vsub.f32 %v931, %v932
  %v934 = vld [vmem:[%s3] sm:$0xff]
  %v935 = vld [vmem:[%s3 + $0x8] sm:$0xff]
  %v936 = vld [vmem:[%s3 + $0x10] sm:$0xff]
  %v937 = vld [vmem:[%s3 + $0x18] sm:$0xff]
  %v938 = vld [vmem:[%s3 + $0x20] sm:$0xff]
  %v939 = vld [vmem:[%s3 + $0x28] sm:$0xff]
  %v940 = vld [vmem:[%s3 + $0x30] sm:$0xff]
  %v941 = vld [vmem:[%s3 + $0x38] sm:$0xff]
  %v942 = vld [vmem:[%s3 + $0x40] sm:$0xff]
  %v943 = vld [vmem:[%s3 + $0x48] sm:$0xff]
  %v944 = vld [vmem:[%s3 + $0x50] sm:$0xff]
  %v945 = vld [vmem:[%s3 + $0x58] sm:$0xff]
  %v946 = vld [vmem:[%s3 + $0x60] sm:$0xff]
  %v947 = vld [vmem:[%s3 + $0x68] sm:$0xff]
  %v948 = vld [vmem:[%s3 + $0x70] sm:$0xff]
  %v949 = vld [vmem:[%s3 + $0x78] sm:$0xff]
  %v950 = vld [vmem:[%s3 + $0x80] sm:$0xff]
  %v951 = vld [vmem:[%s3 + $0x88] sm:$0xff]
  %v952 = vld [vmem:[%s3 + $0x90] sm:$0xff]
  %v953 = vld [vmem:[%s3 + $0x98] sm:$0xff]
  %v954 = vld [vmem:[%s3 + $0xa0] sm:$0xff]
  %v955 = vld [vmem:[%s3 + $0xa8] sm:$0xff]
  %v956 = vld [vmem:[%s3 + $0xb0] sm:$0xff]
  %v957 = vld [vmem:[%s3 + $0xb8] sm:$0xff]
  %v958 = vld [vmem:[%s3 + $0xc0] sm:$0xff]
  %v959 = vld [vmem:[%s3 + $0xc8] sm:$0xff]
  %v960 = vld [vmem:[%s3 + $0xd0] sm:$0xff]
  %v961 = vld [vmem:[%s3 + $0xd8] sm:$0xff]
  %v962 = vld [vmem:[%s3 + $0xe0] sm:$0xff]
  %v963 = vld [vmem:[%s3 + $0xe8] sm:$0xff]
  %v964 = vld [vmem:[%s3 + $0xf0] sm:$0xff]
  %v965 = vld [vmem:[%s3 + $0xf8] sm:$0xff]
  %v966 = vld [vmem:[%s3 + $0x100] sm:$0xff]
  %v967 = vld [vmem:[%s3 + $0x108] sm:$0xff]
  %v968 = vld [vmem:[%s3 + $0x110] sm:$0xff]
  %v969 = vld [vmem:[%s3 + $0x118] sm:$0xff]
  %v970 = vld [vmem:[%s3 + $0x120] sm:$0xff]
  %v971 = vld [vmem:[%s3 + $0x128] sm:$0xff]
  %v972 = vld [vmem:[%s3 + $0x130] sm:$0xff]
  %v973 = vld [vmem:[%s3 + $0x138] sm:$0xff]
  %v974 = vld [vmem:[%s3 + $0x140] sm:$0xff]
  %v975 = vld [vmem:[%s3 + $0x148] sm:$0xff]
  %v976 = vld [vmem:[%s3 + $0x150] sm:$0xff]
  %v977 = vld [vmem:[%s3 + $0x158] sm:$0xff]
  %v978 = vld [vmem:[%s3 + $0x160] sm:$0xff]
  %v979 = vld [vmem:[%s3 + $0x168] sm:$0xff]
  %v980 = vld [vmem:[%s3 + $0x170] sm:$0xff]
  %v981 = vld [vmem:[%s3 + $0x178] sm:$0xff]
  %v982 = vld [vmem:[%s3 + $0x180] sm:$0xff]
  %v983 = vld [vmem:[%s3 + $0x188] sm:$0xff]
  %v984 = vld [vmem:[%s3 + $0x190] sm:$0xff]
  %v985 = vld [vmem:[%s3 + $0x198] sm:$0xff]
  %v986 = vld [vmem:[%s3 + $0x1a0] sm:$0xff]
  %v987 = vld [vmem:[%s3 + $0x1a8] sm:$0xff]
  %v988 = vld [vmem:[%s3 + $0x1b0] sm:$0xff]
  %v989 = vld [vmem:[%s3 + $0x1b8] sm:$0xff]
  %v990 = vld [vmem:[%s3 + $0x1c0] sm:$0xff]
  %v991 = vld [vmem:[%s3 + $0x1c8] sm:$0xff]
  %v992 = vld [vmem:[%s3 + $0x1d0] sm:$0xff]
  %v993 = vld [vmem:[%s3 + $0x1d8] sm:$0xff]
  %v994 = vld [vmem:[%s3 + $0x1e0] sm:$0xff]
  %v995 = vld [vmem:[%s3 + $0x1e8] sm:$0xff]
  %v996 = vld [vmem:[%s3 + $0x1f0] sm:$0xff]
  %v997 = vld [vmem:[%s3 + $0x1f8] sm:$0xff]
  %998 = vmatpush.msra.mxu0 %v994
  %999 = vmatpush.msra.mxu0 %v990
  %1000 = vmatpush.msra.mxu0 %v986
  %1001 = vmatpush.msra.mxu0 %v982
  %1002 = vmatpush.msra.mxu0 %v978
  %1003 = vmatpush.msra.mxu0 %v974
  %1004 = vmatpush.msra.mxu0 %v970
  %1005 = vmatpush.msra.mxu0 %v966
  %1006 = vmatpush.msra.mxu0 %v962
  %1007 = vmatpush.msra.mxu0 %v958
  %1008 = vmatpush.msra.mxu0 %v954
  %1009 = vmatpush.msra.mxu0 %v950
  %1010 = vmatpush.msra.mxu0 %v946
  %1011 = vmatpush.msra.mxu0 %v942
  %1012 = vmatpush.msra.mxu0 %v938
  %1013 = vmatpush.msra.mxu0 %v934
  %1014 = vmatmul.f32.gmra.mxu0 %v930
  %v1015 = vpop.f32.mrf.mxu0
  %v1016 = vadd.f32 0.0, %v1015
  %1017 = vdwg.mxu0
  %1018 = vmatpush.msra.mxu0 %v995
  %1019 = vmatpush.msra.mxu0 %v991
  %1020 = vmatpush.msra.mxu0 %v987
  %1021 = vmatpush.msra.mxu0 %v983
  %1022 = vmatpush.msra.mxu0 %v979
  %1023 = vmatpush.msra.mxu0 %v975
  %1024 = vmatpush.msra.mxu0 %v971
  %1025 = vmatpush.msra.mxu0 %v967
  %1026 = vmatpush.msra.mxu0 %v963
  %1027 = vmatpush.msra.mxu0 %v959
  %1028 = vmatpush.msra.mxu0 %v955
  %1029 = vmatpush.msra.mxu0 %v951
  %1030 = vmatpush.msra.mxu0 %v947
  %1031 = vmatpush.msra.mxu0 %v943
  %1032 = vmatpush.msra.mxu0 %v939
  %1033 = vmatpush.msra.mxu0 %v935
  %1034 = vmatmul.f32.gmra.mxu0 %v930
  %v1035 = vpop.f32.mrf.mxu0
  %v1036 = vadd.f32 0.0, %v1035
  %1037 = vdwg.mxu0
  %1038 = vmatpush.msra.mxu0 %v996
  %1039 = vmatpush.msra.mxu0 %v992
  %1040 = vmatpush.msra.mxu0 %v988
  %1041 = vmatpush.msra.mxu0 %v984
  %1042 = vmatpush.msra.mxu0 %v980
  %1043 = vmatpush.msra.mxu0 %v976
  %1044 = vmatpush.msra.mxu0 %v972
  %1045 = vmatpush.msra.mxu0 %v968
  %1046 = vmatpush.msra.mxu0 %v964
  %1047 = vmatpush.msra.mxu0 %v960
  %1048 = vmatpush.msra.mxu0 %v956
  %1049 = vmatpush.msra.mxu0 %v952
  %1050 = vmatpush.msra.mxu0 %v948
  %1051 = vmatpush.msra.mxu0 %v944
  %1052 = vmatpush.msra.mxu0 %v940
  %1053 = vmatpush.msra.mxu0 %v936
  %1054 = vmatmul.f32.gmra.mxu0 %v930
  %v1055 = vpop.f32.mrf.mxu0
  %v1056 = vadd.f32 0.0, %v1055
  %1057 = vdwg.mxu0
  %1058 = vmatpush.msra.mxu0 %v997
  %1059 = vmatpush.msra.mxu0 %v993
  %1060 = vmatpush.msra.mxu0 %v989
  %1061 = vmatpush.msra.mxu0 %v985
  %1062 = vmatpush.msra.mxu0 %v981
  %1063 = vmatpush.msra.mxu0 %v977
  %1064 = vmatpush.msra.mxu0 %v973
  %1065 = vmatpush.msra.mxu0 %v969
  %1066 = vmatpush.msra.mxu0 %v965
  %1067 = vmatpush.msra.mxu0 %v961
  %1068 = vmatpush.msra.mxu0 %v957
  %1069 = vmatpush.msra.mxu0 %v953
  %1070 = vmatpush.msra.mxu0 %v949
  %1071 = vmatpush.msra.mxu0 %v945
  %1072 = vmatpush.msra.mxu0 %v941
  %1073 = vmatpush.msra.mxu0 %v937
  %1074 = vmatmul.f32.gmra.mxu0 %v930
  %v1075 = vpop.f32.mrf.mxu0
  %v1076 = vadd.f32 0.0, %v1075
  %1077 = vdwg.mxu0
  %1078 = vmatpush.msra.mxu0 %v994
  %1079 = vmatpush.msra.mxu0 %v990
  %1080 = vmatpush.msra.mxu0 %v986
  %1081 = vmatpush.msra.mxu0 %v982
  %1082 = vmatpush.msra.mxu0 %v978
  %1083 = vmatpush.msra.mxu0 %v974
  %1084 = vmatpush.msra.mxu0 %v970
  %1085 = vmatpush.msra.mxu0 %v966
  %1086 = vmatpush.msra.mxu0 %v962
  %1087 = vmatpush.msra.mxu0 %v958
  %1088 = vmatpush.msra.mxu0 %v954
  %1089 = vmatpush.msra.mxu0 %v950
  %1090 = vmatpush.msra.mxu0 %v946
  %1091 = vmatpush.msra.mxu0 %v942
  %1092 = vmatpush.msra.mxu0 %v938
  %1093 = vmatpush.msra.mxu0 %v934
  %1094 = vmatmul.f32.gmra.mxu0 %v933
  %v1095 = vpop.f32.mrf.mxu0
  %v1096 = vadd.f32 0.0, %v1095
  %1097 = vdwg.mxu0
  %1098 = vmatpush.msra.mxu0 %v995
  %1099 = vmatpush.msra.mxu0 %v991
  %1100 = vmatpush.msra.mxu0 %v987
  %1101 = vmatpush.msra.mxu0 %v983
  %1102 = vmatpush.msra.mxu0 %v979
  %1103 = vmatpush.msra.mxu0 %v975
  %1104 = vmatpush.msra.mxu0 %v971
  %1105 = vmatpush.msra.mxu0 %v967
  %1106 = vmatpush.msra.mxu0 %v963
  %1107 = vmatpush.msra.mxu0 %v959
  %1108 = vmatpush.msra.mxu0 %v955
  %1109 = vmatpush.msra.mxu0 %v951
  %1110 = vmatpush.msra.mxu0 %v947
  %1111 = vmatpush.msra.mxu0 %v943
  %1112 = vmatpush.msra.mxu0 %v939
  %1113 = vmatpush.msra.mxu0 %v935
  %1114 = vmatmul.f32.gmra.mxu0 %v933
  %v1115 = vpop.f32.mrf.mxu0
  %v1116 = vadd.f32 0.0, %v1115
  %1117 = vdwg.mxu0
  %1118 = vmatpush.msra.mxu0 %v996
  %1119 = vmatpush.msra.mxu0 %v992
  %1120 = vmatpush.msra.mxu0 %v988
  %1121 = vmatpush.msra.mxu0 %v984
  %1122 = vmatpush.msra.mxu0 %v980
  %1123 = vmatpush.msra.mxu0 %v976
  %1124 = vmatpush.msra.mxu0 %v972
  %1125 = vmatpush.msra.mxu0 %v968
  %1126 = vmatpush.msra.mxu0 %v964
  %1127 = vmatpush.msra.mxu0 %v960
  %1128 = vmatpush.msra.mxu0 %v956
  %1129 = vmatpush.msra.mxu0 %v952
  %1130 = vmatpush.msra.mxu0 %v948
  %1131 = vmatpush.msra.mxu0 %v944
  %1132 = vmatpush.msra.mxu0 %v940
  %1133 = vmatpush.msra.mxu0 %v936
  %1134 = vmatmul.f32.gmra.mxu0 %v933
  %v1135 = vpop.f32.mrf.mxu0
  %v1136 = vadd.f32 0.0, %v1135
  %1137 = vdwg.mxu0
  %1138 = vmatpush.msra.mxu0 %v997
  %1139 = vmatpush.msra.mxu0 %v993
  %1140 = vmatpush.msra.mxu0 %v989
  %1141 = vmatpush.msra.mxu0 %v985
  %1142 = vmatpush.msra.mxu0 %v981
  %1143 = vmatpush.msra.mxu0 %v977
  %1144 = vmatpush.msra.mxu0 %v973
  %1145 = vmatpush.msra.mxu0 %v969
  %1146 = vmatpush.msra.mxu0 %v965
  %1147 = vmatpush.msra.mxu0 %v961
  %1148 = vmatpush.msra.mxu0 %v957
  %1149 = vmatpush.msra.mxu0 %v953
  %1150 = vmatpush.msra.mxu0 %v949
  %1151 = vmatpush.msra.mxu0 %v945
  %1152 = vmatpush.msra.mxu0 %v941
  %1153 = vmatpush.msra.mxu0 %v937
  %1154 = vmatmul.f32.gmra.mxu0 %v933
  %v1155 = vpop.f32.mrf.mxu0
  %v1156 = vadd.f32 0.0, %v1155
  %1157 = vdwg.mxu0
  %v1158 = vperm.slane %v1016, 0
  %v1159 = vperm.slane %v1036, 0
  %v1160 = vperm.slane %v1056, 0
  %v1161 = vperm.slane %v1076, 0
  %v1162 = vmul.f32 %v460, %v1158
  %v1163 = vmul.f32 %v498, %v1159
  %v1164 = vmul.f32 %v536, %v1160
  %v1165 = vmul.f32 %v574, %v1161
  %v1166 = vmul.f32 %v462, %v1158
  %v1167 = vmul.f32 %v500, %v1159
  %v1168 = vmul.f32 %v538, %v1160
  %v1169 = vmul.f32 %v576, %v1161
  %v1170 = vmul.f32 %v465, %v1158
  %v1171 = vmul.f32 %v503, %v1159
  %v1172 = vmul.f32 %v541, %v1160
  %v1173 = vmul.f32 %v579, %v1161
  %v1174 = vmul.f32 %v467, %v1158
  %v1175 = vmul.f32 %v505, %v1159
  %v1176 = vmul.f32 %v543, %v1160
  %v1177 = vmul.f32 %v581, %v1161
  %v1178 = vperm.slane %v1096, 0
  %v1179 = vperm.slane %v1116, 0
  %v1180 = vperm.slane %v1136, 0
  %v1181 = vperm.slane %v1156, 0
  %v1182 = vadd.f32 %v1162, %v1178
  %v1183 = vadd.f32 %v1163, %v1179
  %v1184 = vadd.f32 %v1164, %v1180
  %v1185 = vadd.f32 %v1165, %v1181
  %v1186 = vadd.f32 %v1166, %v1178
  %v1187 = vadd.f32 %v1167, %v1179
  %v1188 = vadd.f32 %v1168, %v1180
  %v1189 = vadd.f32 %v1169, %v1181
  %v1190 = vadd.f32 %v1170, %v1178
  %v1191 = vadd.f32 %v1171, %v1179
  %v1192 = vadd.f32 %v1172, %v1180
  %v1193 = vadd.f32 %v1173, %v1181
  %v1194 = vadd.f32 %v1174, %v1178
  %v1195 = vadd.f32 %v1175, %v1179
  %v1196 = vadd.f32 %v1176, %v1180
  %v1197 = vadd.f32 %v1177, %v1181
  %v1198 = vmax.f32 %v1182, 0.0
  %v1199 = vmax.f32 %v1183, 0.0
  %v1200 = vmax.f32 %v1184, 0.0
  %v1201 = vmax.f32 %v1185, 0.0
  %v1202 = vmax.f32 %v1186, 0.0
  %v1203 = vmax.f32 %v1187, 0.0
  %v1204 = vmax.f32 %v1188, 0.0
  %v1205 = vmax.f32 %v1189, 0.0
  %v1206 = vmax.f32 %v1190, 0.0
  %v1207 = vmax.f32 %v1191, 0.0
  %v1208 = vmax.f32 %v1192, 0.0
  %v1209 = vmax.f32 %v1193, 0.0
  %v1210 = vmax.f32 %v1194, 0.0
  %v1211 = vmax.f32 %v1195, 0.0
  %v1212 = vmax.f32 %v1196, 0.0
  %v1213 = vmax.f32 %v1197, 0.0
  %1214 = vst [vmem:[%s6] sm:$0xff] %v1198
  %1215 = vst [vmem:[%s6 + $0x8] sm:$0xff] %v1199
  %1216 = vst [vmem:[%s6 + $0x10] sm:$0xff] %v1200
  %1217 = vst [vmem:[%s6 + $0x18] sm:$0xff] %v1201
  %1218 = vst [vmem:[%s6 + $0x20] sm:$0xff] %v1202
  %1219 = vst [vmem:[%s6 + $0x28] sm:$0xff] %v1203
  %1220 = vst [vmem:[%s6 + $0x30] sm:$0xff] %v1204
  %1221 = vst [vmem:[%s6 + $0x38] sm:$0xff] %v1205
  %1222 = vst [vmem:[%s6 + $0x40] sm:$0xff] %v1206
  %1223 = vst [vmem:[%s6 + $0x48] sm:$0xff] %v1207
  %1224 = vst [vmem:[%s6 + $0x50] sm:$0xff] %v1208
  %1225 = vst [vmem:[%s6 + $0x58] sm:$0xff] %v1209
  %1226 = vst [vmem:[%s6 + $0x60] sm:$0xff] %v1210
  %1227 = vst [vmem:[%s6 + $0x68] sm:$0xff] %v1211
  %1228 = vst [vmem:[%s6 + $0x70] sm:$0xff] %v1212
  %1229 = vst [vmem:[%s6 + $0x78] sm:$0xff] %v1213
  // Predicated region
  $region26: #{basic_conv_transpose2d.1} parent=0 // pred_check
    _
  $region27: #{basic_conv_transpose2d.1} parent=0 // pred_check_branch
    %1231 = sbr.rel (0) target = $region29
  $region28: #{basic_conv_transpose2d.1} parent=0 // pred_region
    _
  $region29: #{basic_conv_transpose2d.1} parent=0 // pred_fallthru
    _
  // Predicated region
  $region30: #{basic_conv_transpose2d.1} parent=0 // pred_check
    _
  $region31: #{basic_conv_transpose2d.1} parent=0 // pred_check_branch
    %1233 = sbr.rel (0) target = $region33
  $region32: #{basic_conv_transpose2d.1} parent=0 // pred_region
    _
  $region33: #{basic_conv_transpose2d.1} parent=0 // pred_fallthru
    _

</llo_original>
